<compile_context>
chip_gen: v7x
topology: tpu7x:2x2x1
jax: 0.10.0
libtpu: 0.0.40
codegen_flags: <defaults>
</compile_context>

<pallas_src>
import jax
import jax.numpy as jnp
from jax.experimental import pallas as pl
from jax.experimental.pallas import tpu as pltpu

# ----- problem sizes (small, consistent with the module) --------------------
BATCH = 8
IN_FEATURES = 64                                     # prod(input_shape)
OUTPUT_DIM = 2                                       # prod(output_shape)
MIX_COMPONENTS = 10                                  # module default
HIDDEN_DIM = 64                                      # EmbeddingFeedForward hidden dim
SLICE = OUTPUT_DIM * MIX_COMPONENTS                  # 20
FF_OUT = (2 * OUTPUT_DIM + 1) * MIX_COMPONENTS       # 50
OUT_PAD = 128                                        # lane-dense padded output width
TILE_B = 8                                           # one f32 sublane tile


def _softplus(t):
    # numerically stable softplus = log(1 + exp(t))
    return jnp.maximum(t, 0.0) + jnp.log1p(jnp.exp(-jnp.abs(t)))


def proposal_kernel(x_ref, w1_ref, b1_ref, w2_ref, b2_ref, out_ref):
    x = x_ref[...]                                                  # [TB, F]
    # --- 2-layer feed-forward (relu between, no activation on last) ---------
    h = jnp.dot(x, w1_ref[...], preferred_element_type=jnp.float32) + b1_ref[...]
    h = jnp.maximum(h, 0.0)                                         # relu
    y = jnp.dot(h, w2_ref[...], preferred_element_type=jnp.float32) + b2_ref[...]
    # y: [TB, OUT_PAD]; lanes >= FF_OUT carry exact zeros (zero-padded w2/b2).

    # --- full-width epilogue: no unaligned lane slices -----------------------
    col = jax.lax.broadcasted_iota(jnp.int32, y.shape, 1)           # [TB, 128]
    is_logit = jnp.logical_and(col >= 2 * SLICE,
                               col < 2 * SLICE + MIX_COMPONENTS)

    # masked log-softmax over the K mixture-logit lanes only
    masked = jnp.where(is_logit, y, -jnp.inf)
    m = jnp.max(masked, axis=1, keepdims=True)
    e = jnp.exp(masked - m)                                         # 0 outside logits
    lse = m + jnp.log(jnp.sum(e, axis=1, keepdims=True))

    # lanes < 2*SLICE -> softplus (concentrations); logit lanes -> log-softmax;
    # padded lanes get a harmless value and are sliced away by the wrapper.
    out_ref[...] = jnp.where(col < 2 * SLICE, _softplus(y), y - lse)


def proposal_uniform_beta_mixture_forward(x, params, prior_low, prior_high):
    """Returns the Mixture-of-Beta parameters:
       (concentration1s [B, K*D], concentration0s [B, K*D],
        log_coeffs [B, K], prior_lows [B, D], prior_highs [B, D])"""
    w1, b1, w2, b2 = params
    B = x.shape[0]
    assert B % TILE_B == 0, "batch must be a multiple of the sublane tile (8)"

    # host-side zero-pad of the second layer to a lane-dense 128-wide output
    w2p = jnp.zeros((HIDDEN_DIM, OUT_PAD), w2.dtype).at[:, :FF_OUT].set(w2)
    b2p = jnp.zeros((1, OUT_PAD), b2.dtype).at[:, :FF_OUT].set(b2)

    cost = pl.CostEstimate(
        flops=2 * B * (IN_FEATURES * HIDDEN_DIM + HIDDEN_DIM * OUT_PAD),
        transcendentals=3 * B * OUT_PAD,
        bytes_accessed=4 * (x.size + w1.size + b1.size + w2p.size + b2p.size
                            + B * OUT_PAD),
    )

    out = pl.pallas_call(
        proposal_kernel,
        out_shape=jax.ShapeDtypeStruct((B, OUT_PAD), jnp.float32),
        grid=(B // TILE_B,),
        in_specs=[
            pl.BlockSpec((TILE_B, IN_FEATURES), lambda n: (n, 0)),     # x tile
            pl.BlockSpec((IN_FEATURES, HIDDEN_DIM), lambda n: (0, 0)),  # w1 resident
            pl.BlockSpec((1, HIDDEN_DIM), lambda n: (0, 0)),            # b1 resident
            pl.BlockSpec((HIDDEN_DIM, OUT_PAD), lambda n: (0, 0)),      # w2 resident
            pl.BlockSpec((1, OUT_PAD), lambda n: (0, 0)),               # b2 resident
        ],
        out_specs=pl.BlockSpec((TILE_B, OUT_PAD), lambda n: (n, 0)),
        compiler_params=pltpu.CompilerParams(
            dimension_semantics=("parallel",)),
        cost_estimate=cost,
    )(x, w1, b1, w2p, b2p)

    c1 = out[:, :SLICE]
    c0 = out[:, SLICE:2 * SLICE]
    logc = out[:, 2 * SLICE:2 * SLICE + MIX_COMPONENTS]
    # prior low/high are only viewed/broadcast in the torch forward; pass through.
    prior_lows = prior_low.reshape(B, -1)
    prior_highs = prior_high.reshape(B, -1)
    return c1, c0, logc, prior_lows, prior_highs


def init_params(key):
    """Deterministic PyTorch-Linear-style init (uniform +/- 1/sqrt(fan_in)).
       Weights stored as [in, out] (already transposed vs. torch)."""
    k1, k2, k3, k4 = jax.random.split(key, 4)
    lim1 = 1.0 / (IN_FEATURES ** 0.5)
    lim2 = 1.0 / (HIDDEN_DIM ** 0.5)
    w1 = jax.random.uniform(k1, (IN_FEATURES, HIDDEN_DIM), jnp.float32, -lim1, lim1)
    b1 = jax.random.uniform(k2, (1, HIDDEN_DIM), jnp.float32, -lim1, lim1)
    w2 = jax.random.uniform(k3, (HIDDEN_DIM, FF_OUT), jnp.float32, -lim2, lim2)
    b2 = jax.random.uniform(k4, (1, FF_OUT), jnp.float32, -lim2, lim2)
    return w1, b1, w2, b2


def reference_forward(x, params):
    w1, b1, w2, b2 = params
    h = jnp.maximum(x @ w1 + b1, 0.0)
    y = h @ w2 + b2
    c1 = jax.nn.softplus(y[:, :SLICE])
    c0 = jax.nn.softplus(y[:, SLICE:2 * SLICE])
    logc = jax.nn.log_softmax(y[:, 2 * SLICE:], axis=1)
    return c1, c0, logc


if __name__ == "__main__":
    key = jax.random.PRNGKey(0)
    kx, kp = jax.random.split(key)
    x = jax.random.normal(kx, (BATCH, IN_FEATURES), jnp.float32)
    params = init_params(kp)

    # prior Uniform(low, high) per output dim (only passed through the forward)
    prior_low = jnp.zeros((BATCH, OUTPUT_DIM), jnp.float32)
    prior_high = jnp.ones((BATCH, OUTPUT_DIM), jnp.float32)

    c1, c0, logc, lows, highs = proposal_uniform_beta_mixture_forward(
        x, params, prior_low, prior_high)
    jax.block_until_ready((c1, c0, logc))

    # correctness check against pure-JAX reference
    r1, r0, rlogc = reference_forward(x, params)
    assert jnp.allclose(c1, r1, atol=1e-5), "concentration1s mismatch"
    assert jnp.allclose(c0, r0, atol=1e-5), "concentration0s mismatch"
    assert jnp.allclose(logc, rlogc, atol=1e-5), "log_coeffs mismatch"

    # TODO(synk): Mixture/Beta distribution-object construction is host-side
    # bookkeeping in the original module, not tensor math; the kernel emits
    # the distribution parameters only.
    print("KERNEL_OK")
</pallas_src>

<mosaic_0001>
module attributes {stable_mosaic.version = 11 : i64} {
  func.func @proposal_kernel(%arg0: i32, %arg1: memref<8x64xf32, #tpu.memory_space<vmem>>, %arg2: memref<64x64xf32, #tpu.memory_space<vmem>>, %arg3: memref<1x64xf32, #tpu.memory_space<vmem>>, %arg4: memref<64x128xf32, #tpu.memory_space<vmem>>, %arg5: memref<1x128xf32, #tpu.memory_space<vmem>>, %arg6: memref<8x128xf32, #tpu.memory_space<vmem>>) attributes {dimension_semantics = [#tpu.dimension_semantics<parallel>], iteration_bounds = array<i64: 1>, scalar_prefetch = 0 : i64, scratch_operands = 0 : i64, tpu.core_type = #tpu.core_type<tc>, window_params = [{transform_indices = @transform_0, window_bounds = array<i64: 8, 64>}, {pipeline_mode = #tpu.pipeline_mode<synchronous>, transform_indices = @transform_1, window_bounds = array<i64: 64, 64>}, {pipeline_mode = #tpu.pipeline_mode<synchronous>, transform_indices = @transform_2, window_bounds = array<i64: 1, 64>}, {pipeline_mode = #tpu.pipeline_mode<synchronous>, transform_indices = @transform_3, window_bounds = array<i64: 64, 128>}, {pipeline_mode = #tpu.pipeline_mode<synchronous>, transform_indices = @transform_4, window_bounds = array<i64: 1, 128>}, {transform_indices = @transform_5, window_bounds = array<i64: 8, 128>}]} {
    %c0 = arith.constant 0 : index
    %c0_0 = arith.constant 0 : index
    %0 = vector.load %arg1[%c0, %c0_0] : memref<8x64xf32, #tpu.memory_space<vmem>>, vector<8x64xf32>
    %c0_1 = arith.constant 0 : index
    %c0_2 = arith.constant 0 : index
    %1 = vector.load %arg2[%c0_1, %c0_2] : memref<64x64xf32, #tpu.memory_space<vmem>>, vector<64x64xf32>
    %cst = arith.constant dense<0.000000e+00> : vector<8x64xf32>
    %2 = tpu.matmul %0, %1, %cst {dimension_numbers = #tpu.dot_dimension_numbers<[1], [0], [0], [1], [0, 0, 1, 1], [], []>} : vector<8x64xf32>, vector<64x64xf32>, vector<8x64xf32> -> vector<8x64xf32>
    %c0_3 = arith.constant 0 : index
    %c0_4 = arith.constant 0 : index
    %3 = vector.load %arg3[%c0_3, %c0_4] : memref<1x64xf32, #tpu.memory_space<vmem>>, vector<1x64xf32>
    %4 = vector.broadcast %3 : vector<1x64xf32> to vector<8x64xf32>
    %5 = arith.addf %2, %4 : vector<8x64xf32>
    %cst_5 = arith.constant 0.000000e+00 : f32
    %6 = vector.broadcast %cst_5 : f32 to vector<8x64xf32>
    %7 = arith.maximumf %5, %6 : vector<8x64xf32>
    %c0_6 = arith.constant 0 : index
    %c0_7 = arith.constant 0 : index
    %8 = vector.load %arg4[%c0_6, %c0_7] : memref<64x128xf32, #tpu.memory_space<vmem>>, vector<64x128xf32>
    %cst_8 = arith.constant dense<0.000000e+00> : vector<8x128xf32>
    %9 = tpu.matmul %7, %8, %cst_8 {dimension_numbers = #tpu.dot_dimension_numbers<[1], [0], [0], [1], [0, 0, 1, 1], [], []>} : vector<8x64xf32>, vector<64x128xf32>, vector<8x128xf32> -> vector<8x128xf32>
    %c0_9 = arith.constant 0 : index
    %c0_10 = arith.constant 0 : index
    %10 = vector.load %arg5[%c0_9, %c0_10] : memref<1x128xf32, #tpu.memory_space<vmem>>, vector<1x128xf32>
    %11 = vector.broadcast %10 : vector<1x128xf32> to vector<8x128xf32>
    %12 = arith.addf %9, %11 : vector<8x128xf32>
    %13 = tpu.iota {dimensions = array<i32: 1>} : vector<8x128xi32>
    %c40_i32 = arith.constant 40 : i32
    %14 = vector.broadcast %c40_i32 : i32 to vector<8x128xi32>
    %15 = arith.cmpi sge, %13, %14 : vector<8x128xi32>
    %c50_i32 = arith.constant 50 : i32
    %16 = vector.broadcast %c50_i32 : i32 to vector<8x128xi32>
    %17 = arith.cmpi slt, %13, %16 : vector<8x128xi32>
    %18 = arith.andi %15, %17 : vector<8x128xi1>
    %cst_11 = arith.constant 0xFF800000 : f32
    %19 = vector.broadcast %cst_11 : f32 to vector<8x128xf32>
    %20 = arith.select %18, %12, %19 : vector<8x128xi1>, vector<8x128xf32>
    %cst_12 = arith.constant dense<0xFF800000> : vector<8xf32>
    %21 = vector.multi_reduction <maximumf>, %20, %cst_12 [1] : vector<8x128xf32> to vector<8xf32>
    %22 = vector.shape_cast %21 : vector<8xf32> to vector<8x1xf32>
    %23 = vector.broadcast %22 : vector<8x1xf32> to vector<8x128xf32>
    %24 = arith.subf %20, %23 : vector<8x128xf32>
    %25 = math.exp %24 : vector<8x128xf32>
    %cst_13 = arith.constant dense<0.000000e+00> : vector<8xf32>
    %26 = vector.multi_reduction <add>, %25, %cst_13 [1] : vector<8x128xf32> to vector<8xf32>
    %27 = vector.shape_cast %26 : vector<8xf32> to vector<8x1xf32>
    %28 = math.log %27 : vector<8x1xf32>
    %29 = arith.addf %22, %28 : vector<8x1xf32>
    %c40_i32_14 = arith.constant 40 : i32
    %30 = vector.broadcast %c40_i32_14 : i32 to vector<8x128xi32>
    %31 = arith.cmpi slt, %13, %30 : vector<8x128xi32>
    %cst_15 = arith.constant 0.000000e+00 : f32
    %32 = vector.broadcast %cst_15 : f32 to vector<8x128xf32>
    %33 = arith.maximumf %12, %32 : vector<8x128xf32>
    %34 = math.absf %12 : vector<8x128xf32>
    %cst_16 = arith.constant 0.000000e+00 : f32
    %35 = vector.broadcast %cst_16 : f32 to vector<8x128xf32>
    %36 = arith.subf %35, %34 : vector<8x128xf32>
    %37 = math.exp %36 : vector<8x128xf32>
    %38 = math.log1p %37 : vector<8x128xf32>
    %39 = arith.addf %33, %38 : vector<8x128xf32>
    %40 = vector.broadcast %29 : vector<8x1xf32> to vector<8x128xf32>
    %41 = arith.subf %12, %40 : vector<8x128xf32>
    %42 = arith.select %31, %39, %41 : vector<8x128xi1>, vector<8x128xf32>
    %c0_17 = arith.constant 0 : index
    %c0_18 = arith.constant 0 : index
    %43 = vector.load %arg6[%c0_17, %c0_18] : memref<8x128xf32, #tpu.memory_space<vmem>>, vector<8x128xf32>
    tpu.vector_store %arg6[%c0_17, %c0_18], %42 {strides = array<i32>} : memref<8x128xf32, #tpu.memory_space<vmem>>, vector<8x128xf32>,
    return
  }
  func.func @transform_0(%arg0: i32) -> (i32, i32) {
    %c0_i32 = arith.constant 0 : i32
    %c0_i32_0 = arith.constant 0 : i32
    return %arg0, %c0_i32 : i32, i32
  }
  func.func @transform_1(%arg0: i32) -> (i32, i32) {
    %c0_i32 = arith.constant 0 : i32
    %c0_i32_0 = arith.constant 0 : i32
    %c0_i32_1 = arith.constant 0 : i32
    return %c0_i32, %c0_i32_0 : i32, i32
  }
  func.func @transform_2(%arg0: i32) -> (i32, i32) {
    %c0_i32 = arith.constant 0 : i32
    %c0_i32_0 = arith.constant 0 : i32
    %c0_i32_1 = arith.constant 0 : i32
    return %c0_i32, %c0_i32_0 : i32, i32
  }
  func.func @transform_3(%arg0: i32) -> (i32, i32) {
    %c0_i32 = arith.constant 0 : i32
    %c0_i32_0 = arith.constant 0 : i32
    %c0_i32_1 = arith.constant 0 : i32
    return %c0_i32, %c0_i32_0 : i32, i32
  }
  func.func @transform_4(%arg0: i32) -> (i32, i32) {
    %c0_i32 = arith.constant 0 : i32
    %c0_i32_0 = arith.constant 0 : i32
    %c0_i32_1 = arith.constant 0 : i32
    return %c0_i32, %c0_i32_0 : i32, i32
  }
  func.func @transform_5(%arg0: i32) -> (i32, i32) {
    %c0_i32 = arith.constant 0 : i32
    %c0_i32_0 = arith.constant 0 : i32
    return %arg0, %c0_i32 : i32, i32
  }
}

</mosaic_0001>

<llo_original>
// kernel: tpu_custom_call.1
$region0: #{tpu_custom_call.1}
  #allocation0 [shape = 'u32[]', space=smem, size = 0x4, offset = 0x4, fixed_abs, tag = 'smem constant byte address 0x4 - core index']
  #allocation1 [shape = 'u32[144,128]{1,0:T(1,128)}', space=vmem, size = 0x12000, scoped, tag = 'internal scratch']
  %s0 = inlined_call_operand.hbm [shape: f32[8,64], index: 0, kind: input, shape index: {}]
  %s1 = inlined_call_operand.hbm [shape: f32[64,64], index: 1, kind: input, shape index: {}]
  %s2 = inlined_call_operand.vmem [shape: f32[1,64], index: 2, kind: input, shape index: {}]
  %s3 = inlined_call_operand.hbm [shape: f32[64,128], index: 3, kind: input, shape index: {}]
  %s4 = inlined_call_operand.vmem [shape: f32[1,128], index: 4, kind: input, shape index: {}]
  %s5 = inlined_call_operand.hbm [shape: f32[8,128], index: 5, kind: output, shape index: {}]
  %s6 = sld [smem:[#allocation0]]
  $region42: #{tpu_custom_call.1} parent=0
    _
  %s8 = ssub.s32 1, %s6
  %s9 = scalar_select 0, %s8, %s6
  $region1: #{tpu_custom_call.1} parent=0
    #allocation2 [shape = 'u8[4096]{0}', space=vmem, size = 0x1000, scoped, tag = 'input window, operand 0, single buffered']
    #allocation3 [shape = 's32[1]{0}', space=sflag, size = 0x4, scoped, tag = 'scoped memory for tpu_custom_call.1']
    #allocation4 [shape = 's32[1]{0}', space=sflag, size = 0x4, scoped, tag = 'scoped memory for tpu_custom_call.1']
    #allocation5 [shape = 'u8[32768]{0}', space=vmem, size = 0x8000, scoped, tag = 'input window, operand 1, single buffered']
    #allocation6 [shape = 's32[1]{0}', space=sflag, size = 0x4, scoped, tag = 'scoped memory for tpu_custom_call.1']
    #allocation7 [shape = 'u8[32768]{0}', space=vmem, size = 0x8000, scoped, tag = 'input window, operand 3, single buffered']
    #allocation8 [shape = 'u8[4096]{0}', space=vmem, size = 0x1000, scoped, tag = 'output window, operand 0, single buffered']
    %10 = vsyncpa [#allocation3], 0
    %11 = vsyncpa [#allocation6], 0
    %12 = vsyncpa [#allocation4], 0
    // Predicated region
    $region2: #{tpu_custom_call.1} parent=1 // pred_check
      _
    $region3: #{tpu_custom_call.1} parent=1 // pred_check_branch
      %14 = sbr.rel (0) target = $region5
    $region4: #{tpu_custom_call.1} parent=1 // pred_region
      %s16 = ssub.s32 128, 128
      %17 = vsyncadd [#allocation3], %s16
      %s19 = sshll.u32 [#allocation2], 4
      %s20 = int_to_ptr.vmem [resolvable:$true] %s19
      %22 = dma.hbm_to_vmem [thread:$0]  %s0, 128, %s20, [#allocation3]
    $region5: #{tpu_custom_call.1} parent=1 // pred_fallthru
      _
    // Predicated region
    $region6: #{tpu_custom_call.1} parent=1 // pred_check
      _
    $region7: #{tpu_custom_call.1} parent=1 // pred_check_branch
      %24 = sbr.rel (0) target = $region9
    $region8: #{tpu_custom_call.1} parent=1 // pred_region
      %s26 = ssub.s32 1024, 1024
      %27 = vsyncadd [#allocation6], %s26
      %s28 = sshll.u32 [#allocation5], 4
      %s29 = int_to_ptr.vmem [resolvable:$true] %s28
      %34 = dma.hbm_to_vmem [thread:$0]  %s1, 1024, %s29, [#allocation6], 128, 128, 8
    $region9: #{tpu_custom_call.1} parent=1 // pred_fallthru
      _
    // Predicated region
    $region10: #{tpu_custom_call.1} parent=1 // pred_check
      _
    $region11: #{tpu_custom_call.1} parent=1 // pred_check_branch
      %36 = sbr.rel (0) target = $region13
    $region12: #{tpu_custom_call.1} parent=1 // pred_region
      _
    $region13: #{tpu_custom_call.1} parent=1 // pred_fallthru
      _
    // Predicated region
    $region14: #{tpu_custom_call.1} parent=1 // pred_check
      _
    $region15: #{tpu_custom_call.1} parent=1 // pred_check_branch
      %38 = sbr.rel (0) target = $region17
    $region16: #{tpu_custom_call.1} parent=1 // pred_region
      %s40 = ssub.s32 1024, 1024
      %41 = vsyncadd [#allocation6], %s40
      %s42 = sshll.u32 [#allocation7], 4
      %s43 = int_to_ptr.vmem [resolvable:$true] %s42
      %48 = dma.hbm_to_vmem [thread:$0]  %s3, 1024, %s43, [#allocation6], 128, 128, 8
    $region17: #{tpu_custom_call.1} parent=1 // pred_fallthru
      _
    // Predicated region
    $region18: #{tpu_custom_call.1} parent=1 // pred_check
      _
    $region19: #{tpu_custom_call.1} parent=1 // pred_check_branch
      %50 = sbr.rel (0) target = $region21
    $region20: #{tpu_custom_call.1} parent=1 // pred_region
      _
    $region21: #{tpu_custom_call.1} parent=1 // pred_fallthru
      _
    // Predicated region
    $region22: #{tpu_custom_call.1} parent=1 // pred_check
      _
    $region23: #{tpu_custom_call.1} parent=1 // pred_check_branch
      %52 = sbr.rel (0) target = $region25
    $region24: #{tpu_custom_call.1} parent=1 // pred_region
      %53 = dma.done [#allocation3], 128
    $region25: #{tpu_custom_call.1} parent=1 // pred_fallthru
      _
    // Predicated region
    $region26: #{tpu_custom_call.1} parent=1 // pred_check
      _
    $region27: #{tpu_custom_call.1} parent=1 // pred_check_branch
      %55 = sbr.rel (0) target = $region29
    $region28: #{tpu_custom_call.1} parent=1 // pred_region
      %56 = dma.done [#allocation6], 1024
    $region29: #{tpu_custom_call.1} parent=1 // pred_fallthru
      _
    // Predicated region
    $region30: #{tpu_custom_call.1} parent=1 // pred_check
      _
    $region31: #{tpu_custom_call.1} parent=1 // pred_check_branch
      %58 = sbr.rel (0) target = $region33
    $region32: #{tpu_custom_call.1} parent=1 // pred_region
      %59 = dma.done [#allocation6], 1024
    $region33: #{tpu_custom_call.1} parent=1 // pred_fallthru
      _
    %v60 = vld [vmem:[#allocation2] sm:$0xff]
    %v61 = vld [vmem:[#allocation5] sm:$0xff]
    %v62 = vld [vmem:[#allocation5 + $0x8] sm:$0xff]
    %v63 = vld [vmem:[#allocation5 + $0x10] sm:$0xff]
    %v64 = vld [vmem:[#allocation5 + $0x18] sm:$0xff]
    %v65 = vld [vmem:[#allocation5 + $0x20] sm:$0xff]
    %v66 = vld [vmem:[#allocation5 + $0x28] sm:$0xff]
    %v67 = vld [vmem:[#allocation5 + $0x30] sm:$0xff]
    %v68 = vld [vmem:[#allocation5 + $0x38] sm:$0xff]
    %v69 = vld [vmem:[%s2] sm:$0x1]
    %v71 = vlaneseq
    %v72 = vshrl.u32 %v71, 7
    %v73 = vsub.s32 0, %v72
    %v74 = vrot.slane %v69, %v73
    %vm76 = vcmask 523264
    %v78 = vsel %vm76, %v60, 0
    %80 = vmatprep.subr.mxu0 0.0
    %81 = vmatpush1.msra.mxu0 %v61
    %82 = vmatprep.subr.mxu0 0.0
    %83 = vmatpush1.msra.mxu0 %v62
    %84 = vmatprep.subr.mxu0 0.0
    %85 = vmatpush1.msra.mxu0 %v63
    %86 = vmatprep.subr.mxu0 0.0
    %87 = vmatpush1.msra.mxu0 %v64
    %88 = vmatprep.subr.mxu0 0.0
    %89 = vmatpush1.msra.mxu0 %v65
    %90 = vmatprep.subr.mxu0 0.0
    %91 = vmatpush1.msra.mxu0 %v66
    %92 = vmatprep.subr.mxu0 0.0
    %93 = vmatpush1.msra.mxu0 %v67
    %94 = vmatprep.subr.mxu0 0.0
    %95 = vmatpush1.msra.mxu0 %v68
    %96 = vmatprep.subr.mxu0 0.0
    %97 = vmatpush1.msra.mxu0 0.0
    %98 = vmatprep.subr.mxu0 0.0
    %99 = vmatpush1.msra.mxu0 0.0
    %100 = vmatprep.subr.mxu0 0.0
    %101 = vmatpush1.msra.mxu0 0.0
    %102 = vmatprep.subr.mxu0 0.0
    %103 = vmatpush1.msra.mxu0 0.0
    %104 = vmatprep.subr.mxu0 0.0
    %105 = vmatpush1.msra.mxu0 0.0
    %106 = vmatprep.subr.mxu0 0.0
    %107 = vmatpush1.msra.mxu0 0.0
    %108 = vmatprep.subr.mxu0 0.0
    %109 = vmatpush1.msra.mxu0 0.0
    %110 = vmatprep.subr.mxu0 0.0
    %111 = vmatpush1.msra.mxu0 0.0
    %112 = vmatprep.subr.mxu0 0.0
    %113 = vmatpush1.msra.mxu0 0.0
    %114 = vmatprep.subr.mxu0 0.0
    %115 = vmatpush1.msra.mxu0 0.0
    %116 = vmatprep.subr.mxu0 0.0
    %117 = vmatpush1.msra.mxu0 0.0
    %118 = vmatprep.subr.mxu0 0.0
    %119 = vmatpush1.msra.mxu0 0.0
    %120 = vmatprep.subr.mxu0 0.0
    %121 = vmatpush1.msra.mxu0 0.0
    %122 = vmatprep.subr.mxu0 0.0
    %123 = vmatpush1.msra.mxu0 0.0
    %124 = vmatprep.subr.mxu0 0.0
    %125 = vmatpush1.msra.mxu0 0.0
    %126 = vmatprep.subr.mxu0 0.0
    %127 = vmatpush1.msra.mxu0 0.0
    %128 = vmatprep.subr.mxu0 0.0
    %129 = vmatpush1.msra.mxu0 0.0
    %130 = vmatprep.subr.mxu0 0.0
    %131 = vmatpush1.msra.mxu0 0.0
    %132 = vmatprep.subr.mxu0 0.0
    %133 = vmatpush1.msra.mxu0 0.0
    %134 = vmatprep.subr.mxu0 0.0
    %135 = vmatpush1.msra.mxu0 0.0
    %136 = vmatprep.subr.mxu0 0.0
    %137 = vmatpush1.msra.mxu0 0.0
    %138 = vmatprep.subr.mxu0 0.0
    %139 = vmatpush1.msra.mxu0 0.0
    %140 = vmatprep.subr.mxu0 0.0
    %141 = vmatpush1.msra.mxu0 0.0
    %142 = vmatprep.subr.mxu0 0.0
    %143 = vmatpush1.msra.mxu0 0.0
    %144 = vmatprep.mubr.f32.mxu0 0.0
    %145 = vmatmul.mubr.f32.gmra.mrb[0].mxu0 %v78
    %v146 = vpop.f32.mrb[0].mxu0
    %v147 = vadd.f32 %v74, %v146
    %v148 = vpop.f32.mrb[0].mxu0
    %149 = vdwg.mxu0
    %v150 = vmax.f32 %v147, 0.0
    %v151 = vld [vmem:[#allocation7] sm:$0xff]
    %v152 = vld [vmem:[#allocation7 + $0x8] sm:$0xff]
    %v153 = vld [vmem:[#allocation7 + $0x10] sm:$0xff]
    %v154 = vld [vmem:[#allocation7 + $0x18] sm:$0xff]
    %v155 = vld [vmem:[#allocation7 + $0x20] sm:$0xff]
    %v156 = vld [vmem:[#allocation7 + $0x28] sm:$0xff]
    %v157 = vld [vmem:[#allocation7 + $0x30] sm:$0xff]
    %v158 = vld [vmem:[#allocation7 + $0x38] sm:$0xff]
    %v159 = vld [vmem:[%s4] sm:$0x1]
    %v161 = vlaneseq
    %v162 = vshrl.u32 %v161, 7
    %v163 = vsub.s32 0, %v162
    %v164 = vrot.slane %v159, %v163
    %v167 = vsel %vm76, %v150, 0
    %169 = vmatprep.subr.mxu0 0.0
    %170 = vmatpush1.msra.mxu0 %v151
    %171 = vmatprep.subr.mxu0 0.0
    %172 = vmatpush1.msra.mxu0 %v152
    %173 = vmatprep.subr.mxu0 0.0
    %174 = vmatpush1.msra.mxu0 %v153
    %175 = vmatprep.subr.mxu0 0.0
    %176 = vmatpush1.msra.mxu0 %v154
    %177 = vmatprep.subr.mxu0 0.0
    %178 = vmatpush1.msra.mxu0 %v155
    %179 = vmatprep.subr.mxu0 0.0
    %180 = vmatpush1.msra.mxu0 %v156
    %181 = vmatprep.subr.mxu0 0.0
    %182 = vmatpush1.msra.mxu0 %v157
    %183 = vmatprep.subr.mxu0 0.0
    %184 = vmatpush1.msra.mxu0 %v158
    %185 = vmatprep.subr.mxu0 0.0
    %186 = vmatpush1.msra.mxu0 0.0
    %187 = vmatprep.subr.mxu0 0.0
    %188 = vmatpush1.msra.mxu0 0.0
    %189 = vmatprep.subr.mxu0 0.0
    %190 = vmatpush1.msra.mxu0 0.0
    %191 = vmatprep.subr.mxu0 0.0
    %192 = vmatpush1.msra.mxu0 0.0
    %193 = vmatprep.subr.mxu0 0.0
    %194 = vmatpush1.msra.mxu0 0.0
    %195 = vmatprep.subr.mxu0 0.0
    %196 = vmatpush1.msra.mxu0 0.0
    %197 = vmatprep.subr.mxu0 0.0
    %198 = vmatpush1.msra.mxu0 0.0
    %199 = vmatprep.subr.mxu0 0.0
    %200 = vmatpush1.msra.mxu0 0.0
    %201 = vmatprep.subr.mxu0 0.0
    %202 = vmatpush1.msra.mxu0 0.0
    %203 = vmatprep.subr.mxu0 0.0
    %204 = vmatpush1.msra.mxu0 0.0
    %205 = vmatprep.subr.mxu0 0.0
    %206 = vmatpush1.msra.mxu0 0.0
    %207 = vmatprep.subr.mxu0 0.0
    %208 = vmatpush1.msra.mxu0 0.0
    %209 = vmatprep.subr.mxu0 0.0
    %210 = vmatpush1.msra.mxu0 0.0
    %211 = vmatprep.subr.mxu0 0.0
    %212 = vmatpush1.msra.mxu0 0.0
    %213 = vmatprep.subr.mxu0 0.0
    %214 = vmatpush1.msra.mxu0 0.0
    %215 = vmatprep.subr.mxu0 0.0
    %216 = vmatpush1.msra.mxu0 0.0
    %217 = vmatprep.subr.mxu0 0.0
    %218 = vmatpush1.msra.mxu0 0.0
    %219 = vmatprep.subr.mxu0 0.0
    %220 = vmatpush1.msra.mxu0 0.0
    %221 = vmatprep.subr.mxu0 0.0
    %222 = vmatpush1.msra.mxu0 0.0
    %223 = vmatprep.subr.mxu0 0.0
    %224 = vmatpush1.msra.mxu0 0.0
    %225 = vmatprep.subr.mxu0 0.0
    %226 = vmatpush1.msra.mxu0 0.0
    %227 = vmatprep.subr.mxu0 0.0
    %228 = vmatpush1.msra.mxu0 0.0
    %229 = vmatprep.subr.mxu0 0.0
    %230 = vmatpush1.msra.mxu0 0.0
    %231 = vmatprep.subr.mxu0 0.0
    %232 = vmatpush1.msra.mxu0 0.0
    %233 = vmatprep.mubr.f32.mxu0 0.0
    %234 = vmatmul.mubr.f32.gmra.mrb[0].mxu0 %v167
    %v235 = vpop.f32.mrb[0].mxu0
    %v236 = vadd.f32 %v164, %v235
    %v237 = vpop.f32.mrb[0].mxu0
    %238 = vdwg.mxu0
    %v239 = vlaneseq
    %v240 = vand.u32 %v239, 127
    %vm241 = vcmp.ge.s32.totalorder %v240, 40
    %vm242 = vcmp.lt.s32.totalorder %v240, 50
    %vm243 = vmand %vm241, %vm242
    %v244 = vsel %vm243, %v236, -inf
    %245 = vmax.xlane.f32.xlu0 %v244
    %v246 = vpop.xlane.xlu0 %245
    %v247 = vsub.f32 %v244, %v246
    %v248 = vmul.f32 %v247, 1.442695
    %v249 = vpow.pop %v248
    %250 = vadd.xlane.f32.xlu0 %v249
    %v251 = vpop.xlane.xlu0 %250
    %v252 = vlog2.pop %v251
    %v253 = vmul.f32 %v252, 0.6931472
    %v254 = vadd.f32 %v246, %v253
    %vm255 = vcmp.lt.s32.totalorder %v240, 40
    %v256 = vmax.f32 %v236, 0.0
    %v257 = vand.u32 2147483647, %v236
    %v258 = vsub.f32 0.0, %v257
    %v259 = vmul.f32 %v258, 1.442695
    %v260 = vpow.pop %v259
    %v261 = vadd.f32 %v260, 1.0
    %v262 = vlog2.pop %v261
    %v263 = vmul.f32 %v262, 0.6931472
    %v264 = vmul.f32 -0.5, %v260
    %v265 = vadd.f32 %v264, 1.0
    %v266 = vmul.f32 %v265, %v260
    %v267 = vand.u32 2147483647, %v260
    %vm268 = vcmp.lt.f32.partialorder %v267, 0.0004427343
    %v269 = vsel %vm268, %v266, %v263
    %v270 = vadd.f32 %v256, %v269
    %v271 = vsub.f32 %v236, %v254
    %v272 = vsel %vm255, %v270, %v271
    %273 = vst [vmem:[#allocation8] sm:$0xff] %v272
    // Predicated region
    $region34: #{tpu_custom_call.1} parent=1 // pred_check
      _
    $region35: #{tpu_custom_call.1} parent=1 // pred_check_branch
      %275 = sbr.rel (0) target = $region37
    $region36: #{tpu_custom_call.1} parent=1 // pred_region
      %s277 = ssub.s32 128, 128
      %278 = vsyncadd [#allocation4], %s277
      %s280 = sshll.u32 [#allocation8], 4
      %s281 = int_to_ptr.vmem [resolvable:$true] %s280
      %283 = dma.vmem_to_hbm [thread:$0]  %s281, 128, %s5, [#allocation4]
    $region37: #{tpu_custom_call.1} parent=1 // pred_fallthru
      _
    // Predicated region
    $region38: #{tpu_custom_call.1} parent=1 // pred_check
      _
    $region39: #{tpu_custom_call.1} parent=1 // pred_check_branch
      %285 = sbr.rel (0) target = $region41
    $region40: #{tpu_custom_call.1} parent=1 // pred_region
      %286 = dma.done [#allocation4], 128
    $region41: #{tpu_custom_call.1} parent=1 // pred_fallthru
      _
    %287 = vsyncpa [#allocation3], 1
    %288 = vsyncpa [#allocation6], 1
    %289 = vsyncpa [#allocation4], 1

</llo_original>
